<compile_context>
chip_gen: v7x
topology: tpu7x:2x2x1
jax: 0.10.0
libtpu: 0.0.40
codegen_flags: <defaults>
</compile_context>

<pallas_src>
import functools

import jax
import jax.numpy as jnp
from jax.experimental import pallas as pl
from jax.experimental.pallas import tpu as pltpu


def _agg_kernel(x_ref, wqk_ref, wvp_ref, bp_ref, attn_ref, out_ref, *, num_heads: int):
    Bt, N, C = x_ref.shape
    H = num_heads

    x = x_ref[...]                                  # (Bt, N, C) bf16 (cast in wrapper)
    x0 = x[:, 0, :]                                 # (Bt, C) class/query tokens

    # Folded query: qk_flat[b, h*C + c] = scale * x0[b] @ (Wq_h^T @ Wk_h)[:, c]
    # (softmax scale already folded into the weight in the wrapper).
    qk_flat = jnp.dot(x0, wqk_ref[...],
                      preferred_element_type=jnp.float32)          # (Bt, H*C)

    # Relayout (Bt, H*C) -> (Bt, H, C) with one-hot broadcast-multiplies only
    # (avoids lane-splitting reshape / sublane concat, which Mosaic may reject).
    h_ids = jax.lax.broadcasted_iota(jnp.int32, (H, C), 0)          # (H, C)
    qk = None
    for h in range(H):
        piece = qk_flat[:, h * C:(h + 1) * C][:, None, :]           # (Bt, 1, C)
        mask = (h_ids == h).astype(jnp.float32)[None, :, :]         # (1, H, C)
        term = piece * mask                                         # (Bt, H, C)
        qk = term if qk is None else qk + term
    qk = qk.astype(jnp.bfloat16)                                    # (Bt, H, C)

    # logits[b,h,n] = qk[b,h,:] . x[b,n,:]   (single batched dot, M = H per batch)
    logits = jax.lax.dot_general(
        qk, x, (((2,), (2,)), ((0,), (0,))),
        preferred_element_type=jnp.float32)                         # (Bt, H, N)

    # Softmax over N (lane axis), f32, EUP reciprocal.
    m = jnp.max(logits, axis=-1, keepdims=True)
    e = jnp.exp(logits - m)
    p = e * pl.reciprocal(jnp.sum(e, axis=-1, keepdims=True), approx=True)
    attn_ref[...] = p.astype(attn_ref.dtype)                        # lane-dense (Bt, H, N)

    # ctx[b,h,:] = sum_n p[b,h,n] * x[b,n,:]
    ctx = jax.lax.dot_general(
        p.astype(jnp.bfloat16), x, (((2,), (1,)), ((0,), (0,))),
        preferred_element_type=jnp.float32)                         # (Bt, H, C)

    # y[b,:] = sum_h ctx[b,h,:] @ Wvp[h] + b_proj   (Wv and Wproj fused per head;
    # every FLOP contributes — no head mask / cross-sublane reduce needed).
    acc = None
    for h in range(H):
        part = jnp.dot(ctx[:, h, :].astype(jnp.bfloat16), wvp_ref[h],
                       preferred_element_type=jnp.float32)          # (Bt, C)
        acc = part if acc is None else acc + part
    out_ref[...] = (acc + bp_ref[...]).astype(out_ref.dtype)        # lane-dense (Bt, C)


def learned_aggregation(x, wq, wk, wv, wp, bp, *, num_heads: int, block_b: int = 32):
    B, N, C = x.shape
    assert C % num_heads == 0, "dim must be divisible by num_heads"
    H = num_heads
    dh = C // H
    scale = dh ** (-0.5)

    # ---- one-time weight folding (f32), then bf16 for the MXU ----
    wq32, wk32, wv32, wp32 = (jnp.asarray(w, jnp.float32) for w in (wq, wk, wv, wp))
    wq_h = wq32.reshape(H, dh, C)        # Wq[h*dh+j, c]
    wk_h = wk32.reshape(H, dh, C)
    wv_h = wv32.reshape(H, dh, C)
    wpT_h = wp32.T.reshape(H, dh, C)     # Wp[d, h*dh+j] -> [h, j, d]

    # Wqk[h, c, c2] = scale * sum_j Wq[h*dh+j, c] * Wk[h*dh+j, c2]
    wqk = jnp.einsum('hjc,hjd->hcd', wq_h, wk_h) * scale                      # (H, C, C)
    wqk_flat = jnp.transpose(wqk, (1, 0, 2)).reshape(C, H * C).astype(jnp.bfloat16)
    # Wvp[h, c, d] = sum_j Wv[h*dh+j, c] * Wp[d, h*dh+j]   (Wv and Wproj fused)
    wvp = jnp.einsum('hjc,hjd->hcd', wv_h, wpT_h).astype(jnp.bfloat16)        # (H, C, C)
    bp2 = jnp.asarray(bp, jnp.float32).reshape(1, C)

    # ---- VMEM budget / batch-block selection ----
    try:
        phys_vmem = pltpu.get_tpu_info().vmem_capacity_bytes
    except Exception:
        phys_vmem = 64 * 1024 * 1024          # conservative default (v7x per-core)
    budget = int(phys_vmem * 3 // 4)          # ~48 MiB on v7x, ~96 MiB on v5e/v6e

    def est_vmem(bt):
        bf16, f32 = 2, 4
        return (2 * bt * N * C * bf16                  # double-buffered x block
                + 2 * (C * H * C + H * C * C) * bf16   # double-buffered fused weights
                + 2 * C * f32                          # bias
                + 2 * bt * H * N * f32                 # attn output block
                + 2 * bt * C * f32                     # x_cls output block
                + bt * N * C * bf16                    # live x copy / relayouts
                + 4 * bt * H * (N + C) * f32)          # logits / p / ctx / qk slack

    if B <= 8:
        bt = B                                        # single step; bt == padded B (legal block)
    else:
        # multiple of 8; aim for >= 2 grid steps so "parallel" can use both v7x cores
        bt = max(8, (min(block_b, (B + 1) // 2) // 8) * 8)
        while bt > 8 and est_vmem(bt) > budget:
            bt -= 8
    Bp = -(-B // bt) * bt

    xp = x.astype(jnp.bfloat16)                       # halve HBM streaming bytes for x
    if Bp != B:
        xp = jnp.pad(xp, ((0, Bp - B), (0, 0), (0, 0)))

    kernel = functools.partial(_agg_kernel, num_heads=H)

    attn, x_cls = pl.pallas_call(
        kernel,
        out_shape=(
            jax.ShapeDtypeStruct((Bp, H, N), jnp.float32),   # attn (lane-dense in N)
            jax.ShapeDtypeStruct((Bp, C), x.dtype),          # x_cls (lane-dense in C)
        ),
        grid_spec=pltpu.PrefetchScalarGridSpec(
            num_scalar_prefetch=0,
            grid=(Bp // bt,),
            in_specs=[
                pl.BlockSpec((bt, N, C), lambda b: (b, 0, 0)),   # x (bf16)
                pl.BlockSpec((C, H * C), lambda b: (0, 0)),      # folded scale*Wq^T.Wk
                pl.BlockSpec((H, C, C), lambda b: (0, 0, 0)),    # fused Wv.Wproj
                pl.BlockSpec((1, C), lambda b: (0, 0)),          # proj bias
            ],
            out_specs=[
                pl.BlockSpec((bt, H, N), lambda b: (b, 0, 0)),
                pl.BlockSpec((bt, C), lambda b: (b, 0)),
            ],
        ),
        compiler_params=pltpu.CompilerParams(
            dimension_semantics=("parallel",),
            vmem_limit_bytes=budget,
        ),
    )(xp, wqk_flat, wvp, bp2)

    # Re-insert the size-1 dims expected by the module's shapes.
    return attn[:B, :, None, :], x_cls[:B, None, :]


def reference(x, wq, wk, wv, wp, bp, *, num_heads: int):
    B, N, C = x.shape
    dh = C // num_heads
    scale = dh ** (-0.5)
    q = (x[:, 0] @ wq.T).reshape(B, 1, num_heads, dh).transpose(0, 2, 1, 3) * scale
    k = (x @ wk.T).reshape(B, N, num_heads, dh).transpose(0, 2, 1, 3)
    v = (x @ wv.T).reshape(B, N, num_heads, dh).transpose(0, 2, 1, 3)
    attn = jax.nn.softmax(q @ jnp.swapaxes(k, -2, -1), axis=-1)        # (B,H,1,N)
    x_cls = jnp.swapaxes(attn @ v, 1, 2).reshape(B, 1, C) @ wp.T + bp  # (B,1,C)
    return attn, x_cls


if __name__ == "__main__":
    B, N, C = 2, 8, 32
    num_heads = 4

    key = jax.random.PRNGKey(0)
    kx, kq, kk, kv, kp, kb = jax.random.split(key, 6)

    x = jax.random.normal(kx, (B, N, C), dtype=jnp.float32)
    # qkv_bias=False -> no biases on q/k/v; proj has a bias.
    wq = jax.random.normal(kq, (C, C), dtype=jnp.float32) * 0.05
    wk = jax.random.normal(kk, (C, C), dtype=jnp.float32) * 0.05
    wv = jax.random.normal(kv, (C, C), dtype=jnp.float32) * 0.05
    wp = jax.random.normal(kp, (C, C), dtype=jnp.float32) * 0.05
    bp = (jax.random.normal(kb, (1, C), dtype=jnp.float32) * 0.05)

    attn, x_cls = learned_aggregation(x, wq, wk, wv, wp, bp, num_heads=num_heads)
    jax.block_until_ready((attn, x_cls))

    attn_ref, x_cls_ref = reference(x, wq, wk, wv, wp, bp, num_heads=num_heads)
    assert attn.shape == (B, num_heads, 1, N)
    assert x_cls.shape == (B, 1, C)
    assert jnp.allclose(attn, attn_ref, rtol=2e-2, atol=2e-2)
    assert jnp.allclose(x_cls, x_cls_ref, rtol=2e-2, atol=2e-2)

    print("KERNEL_OK")
</pallas_src>

<mosaic_0001>
module attributes {stable_mosaic.version = 11 : i64} {
  func.func @_agg_kernel(%arg0: i32, %arg1: memref<2x8x32xbf16, #tpu.memory_space<vmem>>, %arg2: memref<32x128xbf16, #tpu.memory_space<vmem>>, %arg3: memref<4x32x32xbf16, #tpu.memory_space<vmem>>, %arg4: memref<1x32xf32, #tpu.memory_space<vmem>>, %arg5: memref<2x4x8xf32, #tpu.memory_space<vmem>>, %arg6: memref<2x32xf32, #tpu.memory_space<vmem>>) attributes {dimension_semantics = [#tpu.dimension_semantics<parallel>], iteration_bounds = array<i64: 1>, scalar_prefetch = 0 : i64, scratch_operands = 0 : i64, tpu.core_type = #tpu.core_type<tc>, window_params = [{transform_indices = @transform_0, window_bounds = array<i64: 2, 8, 32>}, {pipeline_mode = #tpu.pipeline_mode<synchronous>, transform_indices = @transform_1, window_bounds = array<i64: 32, 128>}, {pipeline_mode = #tpu.pipeline_mode<synchronous>, transform_indices = @transform_2, window_bounds = array<i64: 4, 32, 32>}, {pipeline_mode = #tpu.pipeline_mode<synchronous>, transform_indices = @transform_3, window_bounds = array<i64: 1, 32>}, {transform_indices = @transform_4, window_bounds = array<i64: 2, 4, 8>}, {transform_indices = @transform_5, window_bounds = array<i64: 2, 32>}]} {
    %c0 = arith.constant 0 : index
    %c0_0 = arith.constant 0 : index
    %c0_1 = arith.constant 0 : index
    %0 = vector.load %arg1[%c0, %c0_0, %c0_1] : memref<2x8x32xbf16, #tpu.memory_space<vmem>>, vector<2x8x32xbf16>
    %1 = vector.extract_strided_slice %0 {offsets = [0, 0, 0], sizes = [2, 1, 32], strides = [1, 1, 1]} : vector<2x8x32xbf16> to vector<2x1x32xbf16>
    %2 = vector.shape_cast %1 : vector<2x1x32xbf16> to vector<2x32xbf16>
    %c0_2 = arith.constant 0 : index
    %c0_3 = arith.constant 0 : index
    %3 = vector.load %arg2[%c0_2, %c0_3] : memref<32x128xbf16, #tpu.memory_space<vmem>>, vector<32x128xbf16>
    %cst = arith.constant dense<0.000000e+00> : vector<2x128xf32>
    %4 = tpu.matmul %2, %3, %cst {dimension_numbers = #tpu.dot_dimension_numbers<[1], [0], [0], [1], [0, 0, 1, 1], [], []>} : vector<2x32xbf16>, vector<32x128xbf16>, vector<2x128xf32> -> vector<2x128xf32>
    %5 = tpu.iota {dimensions = array<i32: 0>} : vector<4x32xi32>
    %6 = vector.extract_strided_slice %4 {offsets = [0, 0], sizes = [2, 32], strides = [1, 1]} : vector<2x128xf32> to vector<2x32xf32>
    %7 = vector.shape_cast %6 : vector<2x32xf32> to vector<2x1x32xf32>
    %c0_i32 = arith.constant 0 : i32
    %8 = vector.broadcast %c0_i32 : i32 to vector<4x32xi32>
    %9 = arith.cmpi eq, %5, %8 : vector<4x32xi32>
    %10 = arith.extui %9 : vector<4x32xi1> to vector<4x32xi32>
    %11 = arith.sitofp %10 : vector<4x32xi32> to vector<4x32xf32>
    %12 = vector.shape_cast %11 : vector<4x32xf32> to vector<1x4x32xf32>
    %13 = vector.broadcast %7 : vector<2x1x32xf32> to vector<2x4x32xf32>
    %14 = vector.broadcast %12 : vector<1x4x32xf32> to vector<2x4x32xf32>
    %15 = arith.mulf %13, %14 : vector<2x4x32xf32>
    %16 = vector.extract_strided_slice %4 {offsets = [0, 32], sizes = [2, 32], strides = [1, 1]} : vector<2x128xf32> to vector<2x32xf32>
    %17 = vector.shape_cast %16 : vector<2x32xf32> to vector<2x1x32xf32>
    %c1_i32 = arith.constant 1 : i32
    %18 = vector.broadcast %c1_i32 : i32 to vector<4x32xi32>
    %19 = arith.cmpi eq, %5, %18 : vector<4x32xi32>
    %20 = arith.extui %19 : vector<4x32xi1> to vector<4x32xi32>
    %21 = arith.sitofp %20 : vector<4x32xi32> to vector<4x32xf32>
    %22 = vector.shape_cast %21 : vector<4x32xf32> to vector<1x4x32xf32>
    %23 = vector.broadcast %17 : vector<2x1x32xf32> to vector<2x4x32xf32>
    %24 = vector.broadcast %22 : vector<1x4x32xf32> to vector<2x4x32xf32>
    %25 = arith.mulf %23, %24 : vector<2x4x32xf32>
    %26 = arith.addf %15, %25 : vector<2x4x32xf32>
    %27 = vector.extract_strided_slice %4 {offsets = [0, 64], sizes = [2, 32], strides = [1, 1]} : vector<2x128xf32> to vector<2x32xf32>
    %28 = vector.shape_cast %27 : vector<2x32xf32> to vector<2x1x32xf32>
    %c2_i32 = arith.constant 2 : i32
    %29 = vector.broadcast %c2_i32 : i32 to vector<4x32xi32>
    %30 = arith.cmpi eq, %5, %29 : vector<4x32xi32>
    %31 = arith.extui %30 : vector<4x32xi1> to vector<4x32xi32>
    %32 = arith.sitofp %31 : vector<4x32xi32> to vector<4x32xf32>
    %33 = vector.shape_cast %32 : vector<4x32xf32> to vector<1x4x32xf32>
    %34 = vector.broadcast %28 : vector<2x1x32xf32> to vector<2x4x32xf32>
    %35 = vector.broadcast %33 : vector<1x4x32xf32> to vector<2x4x32xf32>
    %36 = arith.mulf %34, %35 : vector<2x4x32xf32>
    %37 = arith.addf %26, %36 : vector<2x4x32xf32>
    %38 = vector.extract_strided_slice %4 {offsets = [0, 96], sizes = [2, 32], strides = [1, 1]} : vector<2x128xf32> to vector<2x32xf32>
    %39 = vector.shape_cast %38 : vector<2x32xf32> to vector<2x1x32xf32>
    %c3_i32 = arith.constant 3 : i32
    %40 = vector.broadcast %c3_i32 : i32 to vector<4x32xi32>
    %41 = arith.cmpi eq, %5, %40 : vector<4x32xi32>
    %42 = arith.extui %41 : vector<4x32xi1> to vector<4x32xi32>
    %43 = arith.sitofp %42 : vector<4x32xi32> to vector<4x32xf32>
    %44 = vector.shape_cast %43 : vector<4x32xf32> to vector<1x4x32xf32>
    %45 = vector.broadcast %39 : vector<2x1x32xf32> to vector<2x4x32xf32>
    %46 = vector.broadcast %44 : vector<1x4x32xf32> to vector<2x4x32xf32>
    %47 = arith.mulf %45, %46 : vector<2x4x32xf32>
    %48 = arith.addf %37, %47 : vector<2x4x32xf32>
    %49 = arith.truncf %48 : vector<2x4x32xf32> to vector<2x4x32xbf16>
    %cst_4 = arith.constant dense<0.000000e+00> : vector<2x4x8xf32>
    %50 = tpu.matmul %49, %0, %cst_4 {dimension_numbers = #tpu.dot_dimension_numbers<[2], [2], [1], [1], [0, 0, 0, 1, 1, 1], [0], [0]>} : vector<2x4x32xbf16>, vector<2x8x32xbf16>, vector<2x4x8xf32> -> vector<2x4x8xf32>
    %cst_5 = arith.constant dense<0xFF800000> : vector<2x4xf32>
    %51 = vector.multi_reduction <maximumf>, %50, %cst_5 [2] : vector<2x4x8xf32> to vector<2x4xf32>
    %52 = vector.shape_cast %51 : vector<2x4xf32> to vector<2x4x1xf32>
    %53 = vector.broadcast %52 : vector<2x4x1xf32> to vector<2x4x8xf32>
    %54 = arith.subf %50, %53 : vector<2x4x8xf32>
    %55 = math.exp %54 : vector<2x4x8xf32>
    %cst_6 = arith.constant dense<0.000000e+00> : vector<2x4xf32>
    %56 = vector.multi_reduction <add>, %55, %cst_6 [2] : vector<2x4x8xf32> to vector<2x4xf32>
    %57 = vector.shape_cast %56 : vector<2x4xf32> to vector<2x4x1xf32>
    %58 = tpu.reciprocal %57 {approx = true} : vector<2x4x1xf32> -> vector<2x4x1xf32>
    %59 = vector.broadcast %58 : vector<2x4x1xf32> to vector<2x4x8xf32>
    %60 = arith.mulf %55, %59 : vector<2x4x8xf32>
    %c0_7 = arith.constant 0 : index
    %c0_8 = arith.constant 0 : index
    %c0_9 = arith.constant 0 : index
    %61 = vector.load %arg5[%c0_7, %c0_8, %c0_9] : memref<2x4x8xf32, #tpu.memory_space<vmem>>, vector<2x4x8xf32>
    tpu.vector_store %arg5[%c0_7, %c0_8, %c0_9], %60 {strides = array<i32>} : memref<2x4x8xf32, #tpu.memory_space<vmem>>, vector<2x4x8xf32>,
    %62 = arith.truncf %60 : vector<2x4x8xf32> to vector<2x4x8xbf16>
    %cst_10 = arith.constant dense<0.000000e+00> : vector<2x4x32xf32>
    %63 = tpu.matmul %62, %0, %cst_10 {dimension_numbers = #tpu.dot_dimension_numbers<[2], [1], [1], [2], [0, 0, 0, 1, 1, 2], [0], [0]>} : vector<2x4x8xbf16>, vector<2x8x32xbf16>, vector<2x4x32xf32> -> vector<2x4x32xf32>
    %64 = vector.extract_strided_slice %63 {offsets = [0, 0, 0], sizes = [2, 1, 32], strides = [1, 1, 1]} : vector<2x4x32xf32> to vector<2x1x32xf32>
    %65 = vector.shape_cast %64 : vector<2x1x32xf32> to vector<2x32xf32>
    %66 = arith.truncf %65 : vector<2x32xf32> to vector<2x32xbf16>
    %c0_11 = arith.constant 0 : index
    %c0_12 = arith.constant 0 : index
    %c0_13 = arith.constant 0 : index
    %67 = vector.load %arg3[%c0_11, %c0_12, %c0_13] : memref<4x32x32xbf16, #tpu.memory_space<vmem>>, vector<1x32x32xbf16>
    %68 = vector.shape_cast %67 : vector<1x32x32xbf16> to vector<32x32xbf16>
    %cst_14 = arith.constant dense<0.000000e+00> : vector<2x32xf32>
    %69 = tpu.matmul %66, %68, %cst_14 {dimension_numbers = #tpu.dot_dimension_numbers<[1], [0], [0], [1], [0, 0, 1, 1], [], []>} : vector<2x32xbf16>, vector<32x32xbf16>, vector<2x32xf32> -> vector<2x32xf32>
    %70 = vector.extract_strided_slice %63 {offsets = [0, 1, 0], sizes = [2, 1, 32], strides = [1, 1, 1]} : vector<2x4x32xf32> to vector<2x1x32xf32>
    %71 = vector.shape_cast %70 : vector<2x1x32xf32> to vector<2x32xf32>
    %72 = arith.truncf %71 : vector<2x32xf32> to vector<2x32xbf16>
    %c1 = arith.constant 1 : index
    %c0_15 = arith.constant 0 : index
    %c0_16 = arith.constant 0 : index
    %73 = vector.load %arg3[%c1, %c0_15, %c0_16] : memref<4x32x32xbf16, #tpu.memory_space<vmem>>, vector<1x32x32xbf16>
    %74 = vector.shape_cast %73 : vector<1x32x32xbf16> to vector<32x32xbf16>
    %cst_17 = arith.constant dense<0.000000e+00> : vector<2x32xf32>
    %75 = tpu.matmul %72, %74, %cst_17 {dimension_numbers = #tpu.dot_dimension_numbers<[1], [0], [0], [1], [0, 0, 1, 1], [], []>} : vector<2x32xbf16>, vector<32x32xbf16>, vector<2x32xf32> -> vector<2x32xf32>
    %76 = arith.addf %69, %75 : vector<2x32xf32>
    %77 = vector.extract_strided_slice %63 {offsets = [0, 2, 0], sizes = [2, 1, 32], strides = [1, 1, 1]} : vector<2x4x32xf32> to vector<2x1x32xf32>
    %78 = vector.shape_cast %77 : vector<2x1x32xf32> to vector<2x32xf32>
    %79 = arith.truncf %78 : vector<2x32xf32> to vector<2x32xbf16>
    %c2 = arith.constant 2 : index
    %c0_18 = arith.constant 0 : index
    %c0_19 = arith.constant 0 : index
    %80 = vector.load %arg3[%c2, %c0_18, %c0_19] : memref<4x32x32xbf16, #tpu.memory_space<vmem>>, vector<1x32x32xbf16>
    %81 = vector.shape_cast %80 : vector<1x32x32xbf16> to vector<32x32xbf16>
    %cst_20 = arith.constant dense<0.000000e+00> : vector<2x32xf32>
    %82 = tpu.matmul %79, %81, %cst_20 {dimension_numbers = #tpu.dot_dimension_numbers<[1], [0], [0], [1], [0, 0, 1, 1], [], []>} : vector<2x32xbf16>, vector<32x32xbf16>, vector<2x32xf32> -> vector<2x32xf32>
    %83 = arith.addf %76, %82 : vector<2x32xf32>
    %84 = vector.extract_strided_slice %63 {offsets = [0, 3, 0], sizes = [2, 1, 32], strides = [1, 1, 1]} : vector<2x4x32xf32> to vector<2x1x32xf32>
    %85 = vector.shape_cast %84 : vector<2x1x32xf32> to vector<2x32xf32>
    %86 = arith.truncf %85 : vector<2x32xf32> to vector<2x32xbf16>
    %c3 = arith.constant 3 : index
    %c0_21 = arith.constant 0 : index
    %c0_22 = arith.constant 0 : index
    %87 = vector.load %arg3[%c3, %c0_21, %c0_22] : memref<4x32x32xbf16, #tpu.memory_space<vmem>>, vector<1x32x32xbf16>
    %88 = vector.shape_cast %87 : vector<1x32x32xbf16> to vector<32x32xbf16>
    %cst_23 = arith.constant dense<0.000000e+00> : vector<2x32xf32>
    %89 = tpu.matmul %86, %88, %cst_23 {dimension_numbers = #tpu.dot_dimension_numbers<[1], [0], [0], [1], [0, 0, 1, 1], [], []>} : vector<2x32xbf16>, vector<32x32xbf16>, vector<2x32xf32> -> vector<2x32xf32>
    %90 = arith.addf %83, %89 : vector<2x32xf32>
    %c0_24 = arith.constant 0 : index
    %c0_25 = arith.constant 0 : index
    %91 = vector.load %arg4[%c0_24, %c0_25] : memref<1x32xf32, #tpu.memory_space<vmem>>, vector<1x32xf32>
    %92 = vector.broadcast %91 : vector<1x32xf32> to vector<2x32xf32>
    %93 = arith.addf %90, %92 : vector<2x32xf32>
    %c0_26 = arith.constant 0 : index
    %c0_27 = arith.constant 0 : index
    %94 = vector.load %arg6[%c0_26, %c0_27] : memref<2x32xf32, #tpu.memory_space<vmem>>, vector<2x32xf32>
    tpu.vector_store %arg6[%c0_26, %c0_27], %93 {strides = array<i32>} : memref<2x32xf32, #tpu.memory_space<vmem>>, vector<2x32xf32>,
    return
  }
  func.func @transform_0(%arg0: i32) -> (i32, i32, i32) {
    %c0_i32 = arith.constant 0 : i32
    %c0_i32_0 = arith.constant 0 : i32
    %c0_i32_1 = arith.constant 0 : i32
    return %arg0, %c0_i32, %c0_i32_0 : i32, i32, i32
  }
  func.func @transform_1(%arg0: i32) -> (i32, i32) {
    %c0_i32 = arith.constant 0 : i32
    %c0_i32_0 = arith.constant 0 : i32
    %c0_i32_1 = arith.constant 0 : i32
    return %c0_i32, %c0_i32_0 : i32, i32
  }
  func.func @transform_2(%arg0: i32) -> (i32, i32, i32) {
    %c0_i32 = arith.constant 0 : i32
    %c0_i32_0 = arith.constant 0 : i32
    %c0_i32_1 = arith.constant 0 : i32
    %c0_i32_2 = arith.constant 0 : i32
    return %c0_i32, %c0_i32_0, %c0_i32_1 : i32, i32, i32
  }
  func.func @transform_3(%arg0: i32) -> (i32, i32) {
    %c0_i32 = arith.constant 0 : i32
    %c0_i32_0 = arith.constant 0 : i32
    %c0_i32_1 = arith.constant 0 : i32
    return %c0_i32, %c0_i32_0 : i32, i32
  }
  func.func @transform_4(%arg0: i32) -> (i32, i32, i32) {
    %c0_i32 = arith.constant 0 : i32
    %c0_i32_0 = arith.constant 0 : i32
    %c0_i32_1 = arith.constant 0 : i32
    return %arg0, %c0_i32, %c0_i32_0 : i32, i32, i32
  }
  func.func @transform_5(%arg0: i32) -> (i32, i32) {
    %c0_i32 = arith.constant 0 : i32
    %c0_i32_0 = arith.constant 0 : i32
    return %arg0, %c0_i32 : i32, i32
  }
}

</mosaic_0001>

<llo_original>
// kernel: tpu_custom_call.1
$region0: #{tpu_custom_call.1}
  #allocation0 [shape = 'u32[]', space=smem, size = 0x4, offset = 0x4, fixed_abs, tag = 'smem constant byte address 0x4 - core index']
  #allocation1 [shape = 'u32[144,128]{1,0:T(1,128)}', space=vmem, size = 0x12000, scoped, tag = 'internal scratch']
  %s0 = inlined_call_operand.hbm [shape: bf16[2,8,32], index: 0, kind: input, shape index: {}]
  %s1 = inlined_call_operand.hbm [shape: bf16[32,128], index: 1, kind: input, shape index: {}]
  %s2 = inlined_call_operand.hbm [shape: bf16[4,32,32], index: 2, kind: input, shape index: {}]
  %s3 = inlined_call_operand.vmem [shape: f32[1,32], index: 3, kind: input, shape index: {}]
  %s4 = inlined_call_operand.hbm [shape: f32[2,4,8], index: 4, kind: output, shape index: {0}]
  %s5 = inlined_call_operand.hbm [shape: f32[2,32], index: 5, kind: output, shape index: {1}]
  %6 = xla_tuple %s4, %s5
  %s7 = sld [smem:[#allocation0]]
  $region46: #{tpu_custom_call.1} parent=0
    _
  %s9 = ssub.s32 1, %s7
  %s10 = scalar_select 0, %s9, %s7
  $region1: #{tpu_custom_call.1} parent=0
    #allocation2 [shape = 'u8[4096]{0}', space=vmem, size = 0x1000, scoped, tag = 'input window, operand 0, single buffered']
    #allocation3 [shape = 's32[1]{0}', space=sflag, size = 0x4, scoped, tag = 'scoped memory for tpu_custom_call.1']
    #allocation4 [shape = 's32[1]{0}', space=sflag, size = 0x4, scoped, tag = 'scoped memory for tpu_custom_call.1']
    #allocation5 [shape = 'u8[8192]{0}', space=vmem, size = 0x2000, scoped, tag = 'input window, operand 1, single buffered']
    #allocation6 [shape = 's32[1]{0}', space=sflag, size = 0x4, scoped, tag = 'scoped memory for tpu_custom_call.1']
    #allocation7 [shape = 'u8[32768]{0}', space=vmem, size = 0x8000, scoped, tag = 'input window, operand 2, single buffered']
    #allocation8 [shape = 'u8[4096]{0}', space=vmem, size = 0x1000, scoped, tag = 'output window, operand 0, single buffered']
    #allocation9 [shape = 'u8[1024]{0}', space=vmem, size = 0x400, scoped, tag = 'output window, operand 1, single buffered']
    #allocation10 [shape = 's32[1]{0}', space=sflag, size = 0x4, scoped, tag = 'scoped memory for tpu_custom_call.1']
    %11 = vsyncpa [#allocation3], 0
    %12 = vsyncpa [#allocation6], 0
    %13 = vsyncpa [#allocation4], 0
    %14 = vsyncpa [#allocation10], 0
    // Predicated region
    $region2: #{tpu_custom_call.1} parent=1 // pred_check
      _
    $region3: #{tpu_custom_call.1} parent=1 // pred_check_branch
      %16 = sbr.rel (0) target = $region5
    $region4: #{tpu_custom_call.1} parent=1 // pred_region
      %s18 = ssub.s32 128, 128
      %19 = vsyncadd [#allocation3], %s18
      %s20 = sshll.u32 [#allocation2], 4
      %s21 = int_to_ptr.vmem [resolvable:$true] %s20
      %26 = dma.hbm_to_vmem [thread:$0]  %s0, 128, %s21, [#allocation3], 64, 64, 4
    $region5: #{tpu_custom_call.1} parent=1 // pred_fallthru
      _
    // Predicated region
    $region6: #{tpu_custom_call.1} parent=1 // pred_check
      _
    $region7: #{tpu_custom_call.1} parent=1 // pred_check_branch
      %28 = sbr.rel (0) target = $region9
    $region8: #{tpu_custom_call.1} parent=1 // pred_region
      %s30 = ssub.s32 256, 256
      %31 = vsyncadd [#allocation6], %s30
      %s32 = sshll.u32 [#allocation5], 4
      %s33 = int_to_ptr.vmem [resolvable:$true] %s32
      %38 = dma.hbm_to_vmem [thread:$0]  %s1, 256, %s33, [#allocation6], 64, 64, 4
    $region9: #{tpu_custom_call.1} parent=1 // pred_fallthru
      _
    // Predicated region
    $region10: #{tpu_custom_call.1} parent=1 // pred_check
      _
    $region11: #{tpu_custom_call.1} parent=1 // pred_check_branch
      %40 = sbr.rel (0) target = $region13
    $region12: #{tpu_custom_call.1} parent=1 // pred_region
      %s42 = ssub.s32 1024, 1024
      %43 = vsyncadd [#allocation6], %s42
      %s44 = sshll.u32 [#allocation7], 4
      %s45 = int_to_ptr.vmem [resolvable:$true] %s44
      %50 = dma.hbm_to_vmem [thread:$0]  %s2, 1024, %s45, [#allocation6], 64, 64, 4
    $region13: #{tpu_custom_call.1} parent=1 // pred_fallthru
      _
    // Predicated region
    $region14: #{tpu_custom_call.1} parent=1 // pred_check
      _
    $region15: #{tpu_custom_call.1} parent=1 // pred_check_branch
      %52 = sbr.rel (0) target = $region17
    $region16: #{tpu_custom_call.1} parent=1 // pred_region
      _
    $region17: #{tpu_custom_call.1} parent=1 // pred_fallthru
      _
    // Predicated region
    $region18: #{tpu_custom_call.1} parent=1 // pred_check
      _
    $region19: #{tpu_custom_call.1} parent=1 // pred_check_branch
      %54 = sbr.rel (0) target = $region21
    $region20: #{tpu_custom_call.1} parent=1 // pred_region
      %55 = dma.done [#allocation3], 128
    $region21: #{tpu_custom_call.1} parent=1 // pred_fallthru
      _
    // Predicated region
    $region22: #{tpu_custom_call.1} parent=1 // pred_check
      _
    $region23: #{tpu_custom_call.1} parent=1 // pred_check_branch
      %57 = sbr.rel (0) target = $region25
    $region24: #{tpu_custom_call.1} parent=1 // pred_region
      %58 = dma.done [#allocation6], 256
    $region25: #{tpu_custom_call.1} parent=1 // pred_fallthru
      _
    // Predicated region
    $region26: #{tpu_custom_call.1} parent=1 // pred_check
      _
    $region27: #{tpu_custom_call.1} parent=1 // pred_check_branch
      %60 = sbr.rel (0) target = $region29
    $region28: #{tpu_custom_call.1} parent=1 // pred_region
      %61 = dma.done [#allocation6], 1024
    $region29: #{tpu_custom_call.1} parent=1 // pred_fallthru
      _
    %v63 = vld [vmem:[#allocation2] sm:$0xf]
    %v64 = vld [vmem:[#allocation2 + $0x4] sm:$0xf]
    %v65 = vld [vmem:[#allocation5] sm:$0xf]
    %v66 = vld [vmem:[#allocation5 + $0x4] sm:$0xf]
    %v67 = vld [vmem:[#allocation5 + $0x8] sm:$0xf]
    %v68 = vld [vmem:[#allocation5 + $0xc] sm:$0xf]
    %v71 = vunpack.c.l.b16 %v63
    %v72 = vunpack.c.l.b16 %v64
    %v73 = vpack.c.b16 %v71, %v71
    %v74 = vpack.c.b16 %v72, %v72
    %v75 = vunpack.c.l.b16 %v73
    %v76 = vunpack.c.l.b16 %v74
    %v77 = vrot.slane %v76, 7
    %vm78 = vcmask 1041409
    %v79 = vsel %vm78, %v77, %v75
    %v80 = vpack.c.b16 %v79, %v79
    %v85 = vunpack.c.l.b16 %v65
    %v86 = vunpack.c.l.b16 %v66
    %v87 = vunpack.c.l.b16 %v67
    %v88 = vunpack.c.l.b16 %v68
    %v89 = vpack.c.b16 %v86, %v85
    %v90 = vpack.c.b16 %v88, %v87
    %vm93 = vcmask 261120
    %v95 = vsel %vm93, %v80, 0
    %97 = vmatprep.subr.bf16.mxu0 0
    %98 = vmatpush1.bf16.msra.mxu0 %v89
    %99 = vmatprep.subr.bf16.mxu0 0
    %100 = vmatpush1.bf16.msra.mxu0 %v90
    %101 = vmatprep.subr.bf16.mxu0 0
    %102 = vmatpush1.bf16.msra.mxu0 0
    %103 = vmatprep.subr.bf16.mxu0 0
    %104 = vmatpush1.bf16.msra.mxu0 0
    %105 = vmatprep.subr.bf16.mxu0 0
    %106 = vmatpush1.bf16.msra.mxu0 0
    %107 = vmatprep.subr.bf16.mxu0 0
    %108 = vmatpush1.bf16.msra.mxu0 0
    %109 = vmatprep.subr.bf16.mxu0 0
    %110 = vmatpush1.bf16.msra.mxu0 0
    %111 = vmatprep.subr.bf16.mxu0 0
    %112 = vmatpush1.bf16.msra.mxu0 0
    %113 = vmatprep.subr.bf16.mxu0 0
    %114 = vmatpush1.bf16.msra.mxu0 0
    %115 = vmatprep.subr.bf16.mxu0 0
    %116 = vmatpush1.bf16.msra.mxu0 0
    %117 = vmatprep.subr.bf16.mxu0 0
    %118 = vmatpush1.bf16.msra.mxu0 0
    %119 = vmatprep.subr.bf16.mxu0 0
    %120 = vmatpush1.bf16.msra.mxu0 0
    %121 = vmatprep.subr.bf16.mxu0 0
    %122 = vmatpush1.bf16.msra.mxu0 0
    %123 = vmatprep.subr.bf16.mxu0 0
    %124 = vmatpush1.bf16.msra.mxu0 0
    %125 = vmatprep.subr.bf16.mxu0 0
    %126 = vmatpush1.bf16.msra.mxu0 0
    %127 = vmatprep.subr.bf16.mxu0 0
    %128 = vmatpush1.bf16.msra.mxu0 0
    %129 = vmatprep.mubr.bf16.mxu0 0
    %130 = vmatmul.mubr.bf16.gmra.mrb[0].mxu0 %v95
    %v131 = vpop.f32.mrb[0].mxu0
    %v132 = vadd.f32 0.0, %v131
    %v133 = vpop.f32.mrb[0].mxu0
    %v134 = vpop.f32.mrb[0].mxu0
    %v135 = vpop.f32.mrb[0].mxu0
    %136 = vdwg.mxu0
    %v137 = vlaneseq
    %v138 = vshrl.u32 %v137, 7
    %v141 = vunpack.c.l.s4 1966171168
    %v142 = vunpack.c.0.s8 %v141
    %v143 = vlaneseq
    %v144 = vshrl.u32 %v143, 7
    %v145 = vsub.s32 %v142, %v144
    %v146 = vrot.slane %v132, %v145
    %v147 = vcombine.high %v146, %v146
    %v149 = vunpack.c.l.s4 1966171168
    %v150 = vunpack.c.0.s8 %v149
    %v151 = vlaneseq
    %v152 = vshrl.u32 %v151, 7
    %v153 = vsub.s32 %v150, %v152
    %v154 = vrot.slane %v146, %v153
    %v156 = vunpack.c.l.s4 1966171168
    %v157 = vunpack.c.0.s8 %v156
    %v158 = vlaneseq
    %v159 = vshrl.u32 %v158, 7
    %v160 = vsub.s32 %v157, %v159
    %v161 = vrot.slane %v147, %v160
    %vm162 = vcmp.eq.s32.totalorder %v138, 0
    %v163 = vsel %vm162, 1, 0
    %v164 = vcvt.s32.f32 %v163
    %v165 = vlaneseq
    %v166 = vshrl.u32 %v165, 7
    %v167 = vsub.s32 0, %v166
    %v168 = vrot.slane %v154, %v167
    %v169 = vlaneseq
    %v170 = vshrl.u32 %v169, 7
    %v171 = vsub.s32 0, %v170
    %v172 = vrot.slane %v161, %v171
    %v175 = vmul.f32 %v168, %v164
    %v176 = vmul.f32 %v172, %v164
    %vm177 = vcmp.eq.s32.totalorder %v138, 1
    %v178 = vsel %vm177, 1, 0
    %v179 = vcvt.s32.f32 %v178
    %v180 = vmul.f32 %v168, %v179
    %v181 = vmul.f32 %v172, %v179
    %184 = vrot.lane.b32.xlu0 %v180, 96
    %v185 = vpop.permute.xlu0 %184
    %186 = vrot.lane.b32.xlu0 %v181, 96
    %v187 = vpop.permute.xlu0 %186
    %v190 = vadd.f32 %v175, %v185
    %v191 = vadd.f32 %v176, %v187
    %vm192 = vcmp.eq.s32.totalorder %v138, 2
    %v193 = vsel %vm192, 1, 0
    %v194 = vcvt.s32.f32 %v193
    %v195 = vmul.f32 %v168, %v194
    %v196 = vmul.f32 %v172, %v194
    %199 = vrot.lane.b32.xlu0 %v195, 64
    %v200 = vpop.permute.xlu0 %199
    %201 = vrot.lane.b32.xlu0 %v196, 64
    %v202 = vpop.permute.xlu0 %201
    %v205 = vadd.f32 %v190, %v200
    %v206 = vadd.f32 %v191, %v202
    %vm207 = vcmp.eq.s32.totalorder %v138, 3
    %v208 = vsel %vm207, 1, 0
    %v209 = vcvt.s32.f32 %v208
    %v210 = vmul.f32 %v168, %v209
    %v211 = vmul.f32 %v172, %v209
    %214 = vrot.lane.b32.xlu0 %v210, 32
    %v215 = vpop.permute.xlu0 %214
    %216 = vrot.lane.b32.xlu0 %v211, 32
    %v217 = vpop.permute.xlu0 %216
    %v220 = vadd.f32 %v205, %v215
    %v221 = vadd.f32 %v206, %v217
    %v222 = vpack.c.bf16 %v220, %v220
    %v223 = vpack.c.bf16 %v221, %v221
    %v225 = vsel %vm93, %v222, 0
    %v228 = vsel %vm93, %v63, 0
    %230 = vmatprep.subr.bf16.mxu0 0
    %231 = vmatpush1.bf16.xpose.msra.mxu0 %v228
    %232 = vmatprep.subr.bf16.mxu0 0
    %233 = vmatpush1.bf16.xpose.msra.mxu0 0
    %234 = vmatprep.subr.bf16.mxu0 0
    %235 = vmatpush1.bf16.xpose.msra.mxu0 0
    %236 = vmatprep.subr.bf16.mxu0 0
    %237 = vmatpush1.bf16.xpose.msra.mxu0 0
    %238 = vmatprep.subr.bf16.mxu0 0
    %239 = vmatpush1.bf16.xpose.msra.mxu0 0
    %240 = vmatprep.subr.bf16.mxu0 0
    %241 = vmatpush1.bf16.xpose.msra.mxu0 0
    %242 = vmatprep.subr.bf16.mxu0 0
    %243 = vmatpush1.bf16.xpose.msra.mxu0 0
    %244 = vmatprep.subr.bf16.mxu0 0
    %245 = vmatpush1.bf16.xpose.msra.mxu0 0
    %246 = vmatprep.subr.bf16.mxu0 0
    %247 = vmatpush1.bf16.xpose.msra.mxu0 0
    %248 = vmatprep.subr.bf16.mxu0 0
    %249 = vmatpush1.bf16.xpose.msra.mxu0 0
    %250 = vmatprep.subr.bf16.mxu0 0
    %251 = vmatpush1.bf16.xpose.msra.mxu0 0
    %252 = vmatprep.subr.bf16.mxu0 0
    %253 = vmatpush1.bf16.xpose.msra.mxu0 0
    %254 = vmatprep.subr.bf16.mxu0 0
    %255 = vmatpush1.bf16.xpose.msra.mxu0 0
    %256 = vmatprep.subr.bf16.mxu0 0
    %257 = vmatpush1.bf16.xpose.msra.mxu0 0
    %258 = vmatprep.subr.bf16.mxu0 0
    %259 = vmatpush1.bf16.xpose.msra.mxu0 0
    %260 = vmatprep.subr.bf16.mxu0 0
    %261 = vmatpush1.bf16.xpose.msra.mxu0 0
    %262 = vmatprep.mubr.bf16.mxu0 0
    %263 = vmatmul.mubr.bf16.gmra.mrb[0].mxu0 %v225
    %v264 = vpop.f32.mrb[0].mxu0
    %v265 = vadd.f32 0.0, %v264
    %v266 = vpop.f32.mrb[0].mxu0
    %v267 = vpop.f32.mrb[0].mxu0
    %v268 = vpop.f32.mrb[0].mxu0
    %269 = vdwg.mxu0
    %v271 = vsel %vm93, %v223, 0
    %v274 = vsel %vm93, %v64, 0
    %276 = vmatprep.subr.bf16.mxu0 0
    %277 = vmatpush1.bf16.xpose.msra.mxu0 %v274
    %278 = vmatprep.subr.bf16.mxu0 0
    %279 = vmatpush1.bf16.xpose.msra.mxu0 0
    %280 = vmatprep.subr.bf16.mxu0 0
    %281 = vmatpush1.bf16.xpose.msra.mxu0 0
    %282 = vmatprep.subr.bf16.mxu0 0
    %283 = vmatpush1.bf16.xpose.msra.mxu0 0
    %284 = vmatprep.subr.bf16.mxu0 0
    %285 = vmatpush1.bf16.xpose.msra.mxu0 0
    %286 = vmatprep.subr.bf16.mxu0 0
    %287 = vmatpush1.bf16.xpose.msra.mxu0 0
    %288 = vmatprep.subr.bf16.mxu0 0
    %289 = vmatpush1.bf16.xpose.msra.mxu0 0
    %290 = vmatprep.subr.bf16.mxu0 0
    %291 = vmatpush1.bf16.xpose.msra.mxu0 0
    %292 = vmatprep.subr.bf16.mxu0 0
    %293 = vmatpush1.bf16.xpose.msra.mxu0 0
    %294 = vmatprep.subr.bf16.mxu0 0
    %295 = vmatpush1.bf16.xpose.msra.mxu0 0
    %296 = vmatprep.subr.bf16.mxu0 0
    %297 = vmatpush1.bf16.xpose.msra.mxu0 0
    %298 = vmatprep.subr.bf16.mxu0 0
    %299 = vmatpush1.bf16.xpose.msra.mxu0 0
    %300 = vmatprep.subr.bf16.mxu0 0
    %301 = vmatpush1.bf16.xpose.msra.mxu0 0
    %302 = vmatprep.subr.bf16.mxu0 0
    %303 = vmatpush1.bf16.xpose.msra.mxu0 0
    %304 = vmatprep.subr.bf16.mxu0 0
    %305 = vmatpush1.bf16.xpose.msra.mxu0 0
    %306 = vmatprep.subr.bf16.mxu0 0
    %307 = vmatpush1.bf16.xpose.msra.mxu0 0
    %308 = vmatprep.mubr.bf16.mxu0 0
    %309 = vmatmul.mubr.bf16.gmra.mrb[0].mxu0 %v271
    %v310 = vpop.f32.mrb[0].mxu0
    %v311 = vadd.f32 0.0, %v310
    %v312 = vpop.f32.mrb[0].mxu0
    %v313 = vpop.f32.mrb[0].mxu0
    %v314 = vpop.f32.mrb[0].mxu0
    %315 = vdwg.mxu0
    %vm316 = vcmask 60416
    %v317 = vsel %vm316, %v265, -inf
    %318 = vmax.xlane.f32.xlu0 %v317
    %v319 = vpop.xlane.xlu0 %318
    %v320 = vsel %vm316, %v311, -inf
    %321 = vmax.xlane.f32.xlu0 %v320
    %v322 = vpop.xlane.xlu0 %321
    %v323 = vsub.f32 %v265, %v319
    %v324 = vsub.f32 %v311, %v322
    %v325 = vmul.f32 %v323, 1.442695
    %v326 = vpow.pop %v325
    %v327 = vmul.f32 %v324, 1.442695
    %v328 = vpow.pop %v327
    %v329 = vsel %vm316, %v326, 0.0
    %330 = vadd.xlane.f32.xlu0 %v329
    %v331 = vpop.xlane.xlu0 %330
    %v332 = vsel %vm316, %v328, 0.0
    %333 = vadd.xlane.f32.xlu0 %v332
    %v334 = vpop.xlane.xlu0 %333
    %v335 = vrcp.pop %v331
    %v336 = vrcp.pop %v334
    %v337 = vmul.f32 %v326, %v335
    %v338 = vmul.f32 %v328, %v336
    %339 = vst.msk [vmem:[#allocation8] sm:$0xf] %vm316, %v337
    %340 = vst.msk [vmem:[#allocation8 + $0x4] sm:$0xf] %vm316, %v338
    %v341 = vpack.c.bf16 %v337, %v337
    %v342 = vpack.c.bf16 %v338, %v338
    %vm343 = vcmask 64512
    %v345 = vsel %vm343, %v341, 0
    %vm347 = vcmask 1043456
    %v348 = vsel %vm347, %v63, 0
    %350 = vmatprep.subr.bf16.mxu0 0
    %351 = vmatpush1.bf16.msra.mxu0 %v348
    %352 = vmatprep.subr.bf16.mxu0 0
    %353 = vmatpush1.bf16.msra.mxu0 0
    %354 = vmatprep.subr.bf16.mxu0 0
    %355 = vmatpush1.bf16.msra.mxu0 0
    %356 = vmatprep.subr.bf16.mxu0 0
    %357 = vmatpush1.bf16.msra.mxu0 0
    %358 = vmatprep.subr.bf16.mxu0 0
    %359 = vmatpush1.bf16.msra.mxu0 0
    %360 = vmatprep.subr.bf16.mxu0 0
    %361 = vmatpush1.bf16.msra.mxu0 0
    %362 = vmatprep.subr.bf16.mxu0 0
    %363 = vmatpush1.bf16.msra.mxu0 0
    %364 = vmatprep.subr.bf16.mxu0 0
    %365 = vmatpush1.bf16.msra.mxu0 0
    %366 = vmatprep.subr.bf16.mxu0 0
    %367 = vmatpush1.bf16.msra.mxu0 0
    %368 = vmatprep.subr.bf16.mxu0 0
    %369 = vmatpush1.bf16.msra.mxu0 0
    %370 = vmatprep.subr.bf16.mxu0 0
    %371 = vmatpush1.bf16.msra.mxu0 0
    %372 = vmatprep.subr.bf16.mxu0 0
    %373 = vmatpush1.bf16.msra.mxu0 0
    %374 = vmatprep.subr.bf16.mxu0 0
    %375 = vmatpush1.bf16.msra.mxu0 0
    %376 = vmatprep.subr.bf16.mxu0 0
    %377 = vmatpush1.bf16.msra.mxu0 0
    %378 = vmatprep.subr.bf16.mxu0 0
    %379 = vmatpush1.bf16.msra.mxu0 0
    %380 = vmatprep.subr.bf16.mxu0 0
    %381 = vmatpush1.bf16.msra.mxu0 0
    %382 = vmatprep.mubr.bf16.mxu0 0
    %383 = vmatmul.mubr.bf16.gmra.mrb[0].mxu0 %v345
    %v384 = vpop.f32.mrb[0].mxu0
    %v385 = vadd.f32 0.0, %v384
    %v386 = vpop.f32.mrb[0].mxu0
    %v387 = vpop.f32.mrb[0].mxu0
    %v388 = vpop.f32.mrb[0].mxu0
    %389 = vdwg.mxu0
    %v391 = vsel %vm343, %v342, 0
    %v393 = vsel %vm347, %v64, 0
    %395 = vmatprep.subr.bf16.mxu0 0
    %396 = vmatpush1.bf16.msra.mxu0 %v393
    %397 = vmatprep.subr.bf16.mxu0 0
    %398 = vmatpush1.bf16.msra.mxu0 0
    %399 = vmatprep.subr.bf16.mxu0 0
    %400 = vmatpush1.bf16.msra.mxu0 0
    %401 = vmatprep.subr.bf16.mxu0 0
    %402 = vmatpush1.bf16.msra.mxu0 0
    %403 = vmatprep.subr.bf16.mxu0 0
    %404 = vmatpush1.bf16.msra.mxu0 0
    %405 = vmatprep.subr.bf16.mxu0 0
    %406 = vmatpush1.bf16.msra.mxu0 0
    %407 = vmatprep.subr.bf16.mxu0 0
    %408 = vmatpush1.bf16.msra.mxu0 0
    %409 = vmatprep.subr.bf16.mxu0 0
    %410 = vmatpush1.bf16.msra.mxu0 0
    %411 = vmatprep.subr.bf16.mxu0 0
    %412 = vmatpush1.bf16.msra.mxu0 0
    %413 = vmatprep.subr.bf16.mxu0 0
    %414 = vmatpush1.bf16.msra.mxu0 0
    %415 = vmatprep.subr.bf16.mxu0 0
    %416 = vmatpush1.bf16.msra.mxu0 0
    %417 = vmatprep.subr.bf16.mxu0 0
    %418 = vmatpush1.bf16.msra.mxu0 0
    %419 = vmatprep.subr.bf16.mxu0 0
    %420 = vmatpush1.bf16.msra.mxu0 0
    %421 = vmatprep.subr.bf16.mxu0 0
    %422 = vmatpush1.bf16.msra.mxu0 0
    %423 = vmatprep.subr.bf16.mxu0 0
    %424 = vmatpush1.bf16.msra.mxu0 0
    %425 = vmatprep.subr.bf16.mxu0 0
    %426 = vmatpush1.bf16.msra.mxu0 0
    %427 = vmatprep.mubr.bf16.mxu0 0
    %428 = vmatmul.mubr.bf16.gmra.mrb[0].mxu0 %v391
    %v429 = vpop.f32.mrb[0].mxu0
    %v430 = vadd.f32 0.0, %v429
    %v431 = vpop.f32.mrb[0].mxu0
    %v432 = vpop.f32.mrb[0].mxu0
    %v433 = vpop.f32.mrb[0].mxu0
    %434 = vdwg.mxu0
    %v435 = vpack.c.bf16 %v385, %v385
    %v436 = vpack.c.bf16 %v430, %v430
    %v437 = vld [vmem:[#allocation7] sm:$0xf]
    %v438 = vld [vmem:[#allocation7 + $0x4] sm:$0xf]
    %v439 = vld [vmem:[#allocation7 + $0x8] sm:$0xf]
    %v440 = vld [vmem:[#allocation7 + $0xc] sm:$0xf]
    %s441 = scalar_lea.vmem [#allocation7], 16
    %v442 = vld [vmem:[%s441] sm:$0xf]
    %v443 = vld [vmem:[%s441 + $0x4] sm:$0xf]
    %v444 = vld [vmem:[%s441 + $0x8] sm:$0xf]
    %v445 = vld [vmem:[%s441 + $0xc] sm:$0xf]
    %v448 = vunpack.c.l.b16 %v435
    %v449 = vunpack.c.l.b16 %v436
    %v450 = vrot.slane %v448, 1
    %v451 = vsel %vm78, %v449, %v450
    %v452 = vpack.c.b16 %v451, %v451
    %v457 = vunpack.c.l.b16 %v442
    %v458 = vunpack.c.l.b16 %v443
    %v459 = vunpack.c.l.b16 %v444
    %v460 = vunpack.c.l.b16 %v445
    %v461 = vpack.c.b16 %v458, %v457
    %v462 = vpack.c.b16 %v460, %v459
    %v466 = vsel %vm93, %v452, 0
    %468 = vmatprep.subr.bf16.mxu0 0
    %469 = vmatpush1.bf16.msra.mxu0 %v461
    %470 = vmatprep.subr.bf16.mxu0 0
    %471 = vmatpush1.bf16.msra.mxu0 %v462
    %472 = vmatprep.subr.bf16.mxu0 0
    %473 = vmatpush1.bf16.msra.mxu0 0
    %474 = vmatprep.subr.bf16.mxu0 0
    %475 = vmatpush1.bf16.msra.mxu0 0
    %476 = vmatprep.subr.bf16.mxu0 0
    %477 = vmatpush1.bf16.msra.mxu0 0
    %478 = vmatprep.subr.bf16.mxu0 0
    %479 = vmatpush1.bf16.msra.mxu0 0
    %480 = vmatprep.subr.bf16.mxu0 0
    %481 = vmatpush1.bf16.msra.mxu0 0
    %482 = vmatprep.subr.bf16.mxu0 0
    %483 = vmatpush1.bf16.msra.mxu0 0
    %484 = vmatprep.subr.bf16.mxu0 0
    %485 = vmatpush1.bf16.msra.mxu0 0
    %486 = vmatprep.subr.bf16.mxu0 0
    %487 = vmatpush1.bf16.msra.mxu0 0
    %488 = vmatprep.subr.bf16.mxu0 0
    %489 = vmatpush1.bf16.msra.mxu0 0
    %490 = vmatprep.subr.bf16.mxu0 0
    %491 = vmatpush1.bf16.msra.mxu0 0
    %492 = vmatprep.subr.bf16.mxu0 0
    %493 = vmatpush1.bf16.msra.mxu0 0
    %494 = vmatprep.subr.bf16.mxu0 0
    %495 = vmatpush1.bf16.msra.mxu0 0
    %496 = vmatprep.subr.bf16.mxu0 0
    %497 = vmatpush1.bf16.msra.mxu0 0
    %498 = vmatprep.subr.bf16.mxu0 0
    %499 = vmatpush1.bf16.msra.mxu0 0
    %500 = vmatprep.mubr.bf16.mxu0 0
    %501 = vmatmul.mubr.bf16.gmra.mrb[0].mxu0 %v466
    %v502 = vpop.f32.mrb[0].mxu0
    %v503 = vadd.f32 0.0, %v502
    %v504 = vpop.f32.mrb[0].mxu0
    %v505 = vpop.f32.mrb[0].mxu0
    %v506 = vpop.f32.mrb[0].mxu0
    %507 = vdwg.mxu0
    %v508 = vrot.slane %v449, 7
    %v509 = vsel %vm78, %v508, %v448
    %v510 = vpack.c.b16 %v509, %v509
    %v515 = vunpack.c.l.b16 %v437
    %v516 = vunpack.c.l.b16 %v438
    %v517 = vunpack.c.l.b16 %v439
    %v518 = vunpack.c.l.b16 %v440
    %v519 = vpack.c.b16 %v516, %v515
    %v520 = vpack.c.b16 %v518, %v517
    %v524 = vsel %vm93, %v510, 0
    %526 = vmatprep.subr.bf16.mxu0 0
    %527 = vmatpush1.bf16.msra.mxu0 %v519
    %528 = vmatprep.subr.bf16.mxu0 0
    %529 = vmatpush1.bf16.msra.mxu0 %v520
    %530 = vmatprep.subr.bf16.mxu0 0
    %531 = vmatpush1.bf16.msra.mxu0 0
    %532 = vmatprep.subr.bf16.mxu0 0
    %533 = vmatpush1.bf16.msra.mxu0 0
    %534 = vmatprep.subr.bf16.mxu0 0
    %535 = vmatpush1.bf16.msra.mxu0 0
    %536 = vmatprep.subr.bf16.mxu0 0
    %537 = vmatpush1.bf16.msra.mxu0 0
    %538 = vmatprep.subr.bf16.mxu0 0
    %539 = vmatpush1.bf16.msra.mxu0 0
    %540 = vmatprep.subr.bf16.mxu0 0
    %541 = vmatpush1.bf16.msra.mxu0 0
    %542 = vmatprep.subr.bf16.mxu0 0
    %543 = vmatpush1.bf16.msra.mxu0 0
    %544 = vmatprep.subr.bf16.mxu0 0
    %545 = vmatpush1.bf16.msra.mxu0 0
    %546 = vmatprep.subr.bf16.mxu0 0
    %547 = vmatpush1.bf16.msra.mxu0 0
    %548 = vmatprep.subr.bf16.mxu0 0
    %549 = vmatpush1.bf16.msra.mxu0 0
    %550 = vmatprep.subr.bf16.mxu0 0
    %551 = vmatpush1.bf16.msra.mxu0 0
    %552 = vmatprep.subr.bf16.mxu0 0
    %553 = vmatpush1.bf16.msra.mxu0 0
    %554 = vmatprep.subr.bf16.mxu0 0
    %555 = vmatpush1.bf16.msra.mxu0 0
    %556 = vmatprep.subr.bf16.mxu0 0
    %557 = vmatpush1.bf16.msra.mxu0 0
    %558 = vmatprep.mubr.bf16.mxu0 0
    %559 = vmatmul.mubr.bf16.gmra.mrb[0].mxu0 %v524
    %v560 = vpop.f32.mrb[0].mxu0
    %v561 = vadd.f32 %v503, %v560
    %v562 = vpop.f32.mrb[0].mxu0
    %v563 = vpop.f32.mrb[0].mxu0
    %v564 = vpop.f32.mrb[0].mxu0
    %565 = vdwg.mxu0
    %s566 = scalar_lea.vmem [#allocation7], 32
    %v567 = vld [vmem:[%s566] sm:$0xf]
    %v568 = vld [vmem:[%s566 + $0x4] sm:$0xf]
    %v569 = vld [vmem:[%s566 + $0x8] sm:$0xf]
    %v570 = vld [vmem:[%s566 + $0xc] sm:$0xf]
    %v571 = vrot.slane %v448, 2
    %v572 = vrot.slane %v449, 1
    %v573 = vsel %vm78, %v572, %v571
    %v574 = vpack.c.b16 %v573, %v573
    %v579 = vunpack.c.l.b16 %v567
    %v580 = vunpack.c.l.b16 %v568
    %v581 = vunpack.c.l.b16 %v569
    %v582 = vunpack.c.l.b16 %v570
    %v583 = vpack.c.b16 %v580, %v579
    %v584 = vpack.c.b16 %v582, %v581
    %v588 = vsel %vm93, %v574, 0
    %590 = vmatprep.subr.bf16.mxu0 0
    %591 = vmatpush1.bf16.msra.mxu0 %v583
    %592 = vmatprep.subr.bf16.mxu0 0
    %593 = vmatpush1.bf16.msra.mxu0 %v584
    %594 = vmatprep.subr.bf16.mxu0 0
    %595 = vmatpush1.bf16.msra.mxu0 0
    %596 = vmatprep.subr.bf16.mxu0 0
    %597 = vmatpush1.bf16.msra.mxu0 0
    %598 = vmatprep.subr.bf16.mxu0 0
    %599 = vmatpush1.bf16.msra.mxu0 0
    %600 = vmatprep.subr.bf16.mxu0 0
    %601 = vmatpush1.bf16.msra.mxu0 0
    %602 = vmatprep.subr.bf16.mxu0 0
    %603 = vmatpush1.bf16.msra.mxu0 0
    %604 = vmatprep.subr.bf16.mxu0 0
    %605 = vmatpush1.bf16.msra.mxu0 0
    %606 = vmatprep.subr.bf16.mxu0 0
    %607 = vmatpush1.bf16.msra.mxu0 0
    %608 = vmatprep.subr.bf16.mxu0 0
    %609 = vmatpush1.bf16.msra.mxu0 0
    %610 = vmatprep.subr.bf16.mxu0 0
    %611 = vmatpush1.bf16.msra.mxu0 0
    %612 = vmatprep.subr.bf16.mxu0 0
    %613 = vmatpush1.bf16.msra.mxu0 0
    %614 = vmatprep.subr.bf16.mxu0 0
    %615 = vmatpush1.bf16.msra.mxu0 0
    %616 = vmatprep.subr.bf16.mxu0 0
    %617 = vmatpush1.bf16.msra.mxu0 0
    %618 = vmatprep.subr.bf16.mxu0 0
    %619 = vmatpush1.bf16.msra.mxu0 0
    %620 = vmatprep.subr.bf16.mxu0 0
    %621 = vmatpush1.bf16.msra.mxu0 0
    %622 = vmatprep.mubr.bf16.mxu0 0
    %623 = vmatmul.mubr.bf16.gmra.mrb[0].mxu0 %v588
    %v624 = vpop.f32.mrb[0].mxu0
    %v625 = vadd.f32 0.0, %v624
    %v626 = vpop.f32.mrb[0].mxu0
    %v627 = vpop.f32.mrb[0].mxu0
    %v628 = vpop.f32.mrb[0].mxu0
    %629 = vdwg.mxu0
    %v630 = vadd.f32 %v561, %v625
    %s631 = scalar_lea.vmem [#allocation7], 48
    %v632 = vld [vmem:[%s631] sm:$0xf]
    %v633 = vld [vmem:[%s631 + $0x4] sm:$0xf]
    %v634 = vld [vmem:[%s631 + $0x8] sm:$0xf]
    %v635 = vld [vmem:[%s631 + $0xc] sm:$0xf]
    %v636 = vrot.slane %v448, 3
    %v637 = vrot.slane %v449, 2
    %v638 = vsel %vm78, %v637, %v636
    %v639 = vpack.c.b16 %v638, %v638
    %v644 = vunpack.c.l.b16 %v632
    %v645 = vunpack.c.l.b16 %v633
    %v646 = vunpack.c.l.b16 %v634
    %v647 = vunpack.c.l.b16 %v635
    %v648 = vpack.c.b16 %v645, %v644
    %v649 = vpack.c.b16 %v647, %v646
    %v653 = vsel %vm93, %v639, 0
    %655 = vmatprep.subr.bf16.mxu0 0
    %656 = vmatpush1.bf16.msra.mxu0 %v648
    %657 = vmatprep.subr.bf16.mxu0 0
    %658 = vmatpush1.bf16.msra.mxu0 %v649
    %659 = vmatprep.subr.bf16.mxu0 0
    %660 = vmatpush1.bf16.msra.mxu0 0
    %661 = vmatprep.subr.bf16.mxu0 0
    %662 = vmatpush1.bf16.msra.mxu0 0
    %663 = vmatprep.subr.bf16.mxu0 0
    %664 = vmatpush1.bf16.msra.mxu0 0
    %665 = vmatprep.subr.bf16.mxu0 0
    %666 = vmatpush1.bf16.msra.mxu0 0
    %667 = vmatprep.subr.bf16.mxu0 0
    %668 = vmatpush1.bf16.msra.mxu0 0
    %669 = vmatprep.subr.bf16.mxu0 0
    %670 = vmatpush1.bf16.msra.mxu0 0
    %671 = vmatprep.subr.bf16.mxu0 0
    %672 = vmatpush1.bf16.msra.mxu0 0
    %673 = vmatprep.subr.bf16.mxu0 0
    %674 = vmatpush1.bf16.msra.mxu0 0
    %675 = vmatprep.subr.bf16.mxu0 0
    %676 = vmatpush1.bf16.msra.mxu0 0
    %677 = vmatprep.subr.bf16.mxu0 0
    %678 = vmatpush1.bf16.msra.mxu0 0
    %679 = vmatprep.subr.bf16.mxu0 0
    %680 = vmatpush1.bf16.msra.mxu0 0
    %681 = vmatprep.subr.bf16.mxu0 0
    %682 = vmatpush1.bf16.msra.mxu0 0
    %683 = vmatprep.subr.bf16.mxu0 0
    %684 = vmatpush1.bf16.msra.mxu0 0
    %685 = vmatprep.subr.bf16.mxu0 0
    %686 = vmatpush1.bf16.msra.mxu0 0
    %687 = vmatprep.mubr.bf16.mxu0 0
    %688 = vmatmul.mubr.bf16.gmra.mrb[0].mxu0 %v653
    %v689 = vpop.f32.mrb[0].mxu0
    %v690 = vadd.f32 0.0, %v689
    %v691 = vpop.f32.mrb[0].mxu0
    %v692 = vpop.f32.mrb[0].mxu0
    %v693 = vpop.f32.mrb[0].mxu0
    %694 = vdwg.mxu0
    %v695 = vadd.f32 %v630, %v690
    %v696 = vld [vmem:[%s3] sm:$0x1]
    %v698 = vlaneseq
    %v699 = vshrl.u32 %v698, 7
    %v700 = vsub.s32 0, %v699
    %v701 = vrot.slane %v696, %v700
    %v703 = vadd.f32 %v695, %v701
    %vm704 = vcmask 254976
    %705 = vst.msk [vmem:[#allocation9] sm:$0x3] %vm704, %v703
    // Predicated region
    $region30: #{tpu_custom_call.1} parent=1 // pred_check
      _
    $region31: #{tpu_custom_call.1} parent=1 // pred_check_branch
      %707 = sbr.rel (0) target = $region33
    $region32: #{tpu_custom_call.1} parent=1 // pred_region
      %s709 = ssub.s32 128, 128
      %710 = vsyncadd [#allocation4], %s709
      %s711 = sshll.u32 [#allocation8], 4
      %s712 = int_to_ptr.vmem [resolvable:$true] %s711
      %717 = dma.vmem_to_hbm [thread:$0]  %s712, 128, %s4, [#allocation4], 64, 64, 4
    $region33: #{tpu_custom_call.1} parent=1 // pred_fallthru
      _
    // Predicated region
    $region34: #{tpu_custom_call.1} parent=1 // pred_check
      _
    $region35: #{tpu_custom_call.1} parent=1 // pred_check_branch
      %719 = sbr.rel (0) target = $region37
    $region36: #{tpu_custom_call.1} parent=1 // pred_region
      %s721 = ssub.s32 32, 32
      %722 = vsyncadd [#allocation10], %s721
      %s724 = sshll.u32 [#allocation9], 4
      %s725 = int_to_ptr.vmem [resolvable:$true] %s724
      %727 = dma.vmem_to_hbm [thread:$0]  %s725, 32, %s5, [#allocation10]
    $region37: #{tpu_custom_call.1} parent=1 // pred_fallthru
      _
    // Predicated region
    $region38: #{tpu_custom_call.1} parent=1 // pred_check
      _
    $region39: #{tpu_custom_call.1} parent=1 // pred_check_branch
      %729 = sbr.rel (0) target = $region41
    $region40: #{tpu_custom_call.1} parent=1 // pred_region
      %730 = dma.done [#allocation4], 128
    $region41: #{tpu_custom_call.1} parent=1 // pred_fallthru
      _
    // Predicated region
    $region42: #{tpu_custom_call.1} parent=1 // pred_check
      _
    $region43: #{tpu_custom_call.1} parent=1 // pred_check_branch
      %732 = sbr.rel (0) target = $region45
    $region44: #{tpu_custom_call.1} parent=1 // pred_region
      %733 = dma.done [#allocation10], 32
    $region45: #{tpu_custom_call.1} parent=1 // pred_fallthru
      _
    %734 = vsyncpa [#allocation3], 1
    %735 = vsyncpa [#allocation6], 1
    %736 = vsyncpa [#allocation4], 1
    %737 = vsyncpa [#allocation10], 1

</llo_original>
